<compile_context>
chip_gen: v7x
topology: tpu7x:2x2x1
jax: 0.10.0
libtpu: 0.0.40
codegen_flags: <defaults>
</compile_context>

<pallas_src>
import functools

import jax
import jax.numpy as jnp
from jax.experimental import pallas as pl
from jax.experimental.pallas import tpu as pltpu

LANE = 128
NEG_INF = -1e30  # padded action lanes: effectively -inf without NaN hazards


def _round_up(x, m):
    return ((x + m - 1) // m) * m


def _cdiv(a, b):
    return (a + b - 1) // b


def _actor_kernel(x_ref, w1_ref, b1_ref, w2_ref, b2_ref, w3_ref, b3_ref,
                  out_ref):
    """x: (TM, S) f32, wN: bf16, bN: (1, D) f32, out: (TM, A_pad) f32."""
    # Raw f32 state comes in; cast to bf16 for the MXU on the VPU (free-ish).
    x = x_ref[...].astype(jnp.bfloat16)

    # fc1 + ReLU (MXU bf16, accumulate/bias/ReLU in f32)
    h1 = jnp.dot(x, w1_ref[...], preferred_element_type=jnp.float32)
    h1 = jnp.maximum(h1 + b1_ref[...], 0.0)

    # fc2 + ReLU
    h2 = jnp.dot(h1.astype(jnp.bfloat16), w2_ref[...],
                 preferred_element_type=jnp.float32)
    h2 = jnp.maximum(h2 + b2_ref[...], 0.0)

    # fc3 (padded action lanes get a -1e30 bias -> never win the softmax)
    logits = jnp.dot(h2.astype(jnp.bfloat16), w3_ref[...],
                     preferred_element_type=jnp.float32)
    logits = logits + b3_ref[...]

    # numerically-stable log_softmax over the lane (action) axis
    m = jnp.max(logits, axis=-1, keepdims=True)
    shifted = logits - m
    lse = jnp.log(jnp.sum(jnp.exp(shifted), axis=-1, keepdims=True))
    out_ref[...] = (shifted - lse).astype(out_ref.dtype)


def pack_actor_params(params):
    """Per-layer packing: weights bf16 at true (lane-padded) shapes, biases f32."""
    w1, w2, w3 = params["w1"], params["w2"], params["w3"]
    b1 = params["b1"].reshape(-1)
    b2 = params["b2"].reshape(-1)
    b3 = params["b3"].reshape(-1)

    S, H1 = w1.shape
    _, H2 = w2.shape
    _, A = w3.shape
    H1p, H2p, Ap = _round_up(H1, LANE), _round_up(H2, LANE), _round_up(A, LANE)

    def pad_w(w, rows, cols):
        out = jnp.zeros((rows, cols), jnp.bfloat16)
        return out.at[: w.shape[0], : w.shape[1]].set(w.astype(jnp.bfloat16))

    w1p = pad_w(w1, S, H1p)          # input rows stay at the true state size
    w2p = pad_w(w2, H1p, H2p)
    w3p = pad_w(w3, H2p, Ap)

    b1p = jnp.zeros((1, H1p), jnp.float32).at[0, :H1].set(b1.astype(jnp.float32))
    b2p = jnp.zeros((1, H2p), jnp.float32).at[0, :H2].set(b2.astype(jnp.float32))
    # Padded action lanes must never affect the softmax max/sum.
    b3p = jnp.full((1, Ap), NEG_INF, jnp.float32).at[0, :A].set(
        b3.astype(jnp.float32))

    return dict(w1=w1p, b1=b1p, w2=w2p, b2=b2p, w3=w3p, b3=b3p)


@functools.partial(jax.jit, static_argnames=("action_size", "block_m"))
def actor_forward(state, packed, *, action_size, block_m=1024):
    """state: (B, state_size) f32 -> log-probs (B, action_size) f32."""
    B, S = state.shape
    w1, b1 = packed["w1"], packed["b1"]
    w2, b2 = packed["w2"], packed["b2"]
    w3, b3 = packed["w3"], packed["b3"]
    a_pad = w3.shape[1]

    # Only round the batch up to 16 rows (bf16 sublane pack), NOT to a full
    # tile -- the grid uses cdiv and out-of-bounds rows of the last block are
    # simply dropped on store.
    b_pad = _round_up(B, 16)
    if b_pad != B:
        state = jnp.pad(state, ((0, b_pad - B), (0, 0)))

    # Tile choice: large tiles amortize the ~0.35us per-step overhead; for
    # moderate batches force >= 2 grid steps so v7x's 2nd TensorCore is used.
    if b_pad <= 64:
        tm = b_pad
    else:
        tm = min(block_m, _round_up(_cdiv(b_pad, 2), 16))
    grid = (_cdiv(b_pad, tm),)

    cost = pl.CostEstimate(
        flops=2 * b_pad * (S * w1.shape[1]
                           + w2.shape[0] * w2.shape[1]
                           + w3.shape[0] * w3.shape[1]),
        transcendentals=b_pad * (a_pad + 1),
        bytes_accessed=(b_pad * S * 4
                        + (w1.size + w2.size + w3.size) * 2
                        + (b1.size + b2.size + b3.size) * 4
                        + b_pad * a_pad * 4),
    )

    out = pl.pallas_call(
        _actor_kernel,
        out_shape=jax.ShapeDtypeStruct((b_pad, a_pad), jnp.float32),
        grid=grid,
        in_specs=[
            pl.BlockSpec((tm, S), lambda i: (i, 0)),       # raw f32 state, tiled
            pl.BlockSpec(w1.shape, lambda i: (0, 0)),      # weights/biases:
            pl.BlockSpec(b1.shape, lambda i: (0, 0)),      #  constant index_map
            pl.BlockSpec(w2.shape, lambda i: (0, 0)),      #  -> VMEM-resident
            pl.BlockSpec(b2.shape, lambda i: (0, 0)),
            pl.BlockSpec(w3.shape, lambda i: (0, 0)),
            pl.BlockSpec(b3.shape, lambda i: (0, 0)),
        ],
        out_specs=pl.BlockSpec((tm, a_pad), lambda i: (i, 0)),  # lane-dense store
        compiler_params=pltpu.CompilerParams(
            dimension_semantics=("parallel",)),
        cost_estimate=cost,
    )(state, w1, b1, w2, b2, w3, b3)

    return out[:B, :action_size]


def init_actor_params(key, state_size, action_size, hidden=(128, 128)):
    """Deterministic init mimicking nn.Linear's U(-1/sqrt(fan_in), +...)."""
    dims = [state_size, hidden[0], hidden[1], action_size]
    params = {}
    for i in range(3):
        key, kw, kb = jax.random.split(key, 3)
        fan_in, fan_out = dims[i], dims[i + 1]
        bound = 1.0 / jnp.sqrt(jnp.float32(fan_in))
        # stored as (in, out) so the kernel uses x @ W (== PyTorch x @ W.T)
        params[f"w{i+1}"] = jax.random.uniform(
            kw, (fan_in, fan_out), jnp.float32, -bound, bound)
        params[f"b{i+1}"] = jax.random.uniform(
            kb, (1, fan_out), jnp.float32, -bound, bound)
    return params


def actor_ref(state, params):
    """Pure-JAX f32 reference for correctness checking."""
    h1 = jnp.maximum(state @ params["w1"] + params["b1"], 0.0)
    h2 = jnp.maximum(h1 @ params["w2"] + params["b2"], 0.0)
    logits = h2 @ params["w3"] + params["b3"]
    return jax.nn.log_softmax(logits, axis=1)


if __name__ == "__main__":
    key = jax.random.PRNGKey(0)
    B, STATE_SIZE, ACTION_SIZE = 2, 8, 4
    HIDDEN = (128, 128)

    key, pk, xk = jax.random.split(key, 3)
    params = init_actor_params(pk, STATE_SIZE, ACTION_SIZE, HIDDEN)
    state = jax.random.normal(xk, (B, STATE_SIZE), jnp.float32)

    packed = pack_actor_params(params)
    out = actor_forward(state, packed, action_size=ACTION_SIZE)
    out = jax.block_until_ready(out)

    ref = actor_ref(state, params)
    assert out.shape == (B, ACTION_SIZE)
    # bf16 matmul inputs -> relaxed tolerance vs f32 reference
    assert jnp.allclose(out, ref, atol=5e-2, rtol=5e-2), "mismatch vs reference"
    # log_softmax rows must sum (in prob space) to 1
    assert jnp.allclose(jnp.sum(jnp.exp(out), axis=1), 1.0, atol=1e-3)

    print("KERNEL_OK")
</pallas_src>

<mosaic_0001>
module attributes {stable_mosaic.version = 11 : i64} {
  func.func @_actor_kernel(%arg0: i32, %arg1: memref<16x8xf32, #tpu.memory_space<vmem>>, %arg2: memref<8x128xbf16, #tpu.memory_space<vmem>>, %arg3: memref<1x128xf32, #tpu.memory_space<vmem>>, %arg4: memref<128x128xbf16, #tpu.memory_space<vmem>>, %arg5: memref<1x128xf32, #tpu.memory_space<vmem>>, %arg6: memref<128x128xbf16, #tpu.memory_space<vmem>>, %arg7: memref<1x128xf32, #tpu.memory_space<vmem>>, %arg8: memref<16x128xf32, #tpu.memory_space<vmem>>) attributes {dimension_semantics = [#tpu.dimension_semantics<parallel>], iteration_bounds = array<i64: 1>, scalar_prefetch = 0 : i64, scratch_operands = 0 : i64, tpu.core_type = #tpu.core_type<tc>, window_params = [{transform_indices = @transform_0, window_bounds = array<i64: 16, 8>}, {pipeline_mode = #tpu.pipeline_mode<synchronous>, transform_indices = @transform_1, window_bounds = array<i64: 8, 128>}, {pipeline_mode = #tpu.pipeline_mode<synchronous>, transform_indices = @transform_2, window_bounds = array<i64: 1, 128>}, {pipeline_mode = #tpu.pipeline_mode<synchronous>, transform_indices = @transform_3, window_bounds = array<i64: 128, 128>}, {pipeline_mode = #tpu.pipeline_mode<synchronous>, transform_indices = @transform_4, window_bounds = array<i64: 1, 128>}, {pipeline_mode = #tpu.pipeline_mode<synchronous>, transform_indices = @transform_5, window_bounds = array<i64: 128, 128>}, {pipeline_mode = #tpu.pipeline_mode<synchronous>, transform_indices = @transform_6, window_bounds = array<i64: 1, 128>}, {transform_indices = @transform_7, window_bounds = array<i64: 16, 128>}]} {
    %c0 = arith.constant 0 : index
    %c0_0 = arith.constant 0 : index
    %0 = vector.load %arg1[%c0, %c0_0] : memref<16x8xf32, #tpu.memory_space<vmem>>, vector<16x8xf32>
    %1 = arith.truncf %0 : vector<16x8xf32> to vector<16x8xbf16>
    %c0_1 = arith.constant 0 : index
    %c0_2 = arith.constant 0 : index
    %2 = vector.load %arg2[%c0_1, %c0_2] : memref<8x128xbf16, #tpu.memory_space<vmem>>, vector<8x128xbf16>
    %cst = arith.constant dense<0.000000e+00> : vector<16x128xf32>
    %3 = tpu.matmul %1, %2, %cst {dimension_numbers = #tpu.dot_dimension_numbers<[1], [0], [0], [1], [0, 0, 1, 1], [], []>} : vector<16x8xbf16>, vector<8x128xbf16>, vector<16x128xf32> -> vector<16x128xf32>
    %c0_3 = arith.constant 0 : index
    %c0_4 = arith.constant 0 : index
    %4 = vector.load %arg3[%c0_3, %c0_4] : memref<1x128xf32, #tpu.memory_space<vmem>>, vector<1x128xf32>
    %5 = vector.broadcast %4 : vector<1x128xf32> to vector<16x128xf32>
    %6 = arith.addf %3, %5 : vector<16x128xf32>
    %cst_5 = arith.constant 0.000000e+00 : f32
    %7 = vector.broadcast %cst_5 : f32 to vector<16x128xf32>
    %8 = arith.maximumf %6, %7 : vector<16x128xf32>
    %9 = arith.truncf %8 : vector<16x128xf32> to vector<16x128xbf16>
    %c0_6 = arith.constant 0 : index
    %c0_7 = arith.constant 0 : index
    %10 = vector.load %arg4[%c0_6, %c0_7] : memref<128x128xbf16, #tpu.memory_space<vmem>>, vector<128x128xbf16>
    %cst_8 = arith.constant dense<0.000000e+00> : vector<16x128xf32>
    %11 = tpu.matmul %9, %10, %cst_8 {dimension_numbers = #tpu.dot_dimension_numbers<[1], [0], [0], [1], [0, 0, 1, 1], [], []>} : vector<16x128xbf16>, vector<128x128xbf16>, vector<16x128xf32> -> vector<16x128xf32>
    %c0_9 = arith.constant 0 : index
    %c0_10 = arith.constant 0 : index
    %12 = vector.load %arg5[%c0_9, %c0_10] : memref<1x128xf32, #tpu.memory_space<vmem>>, vector<1x128xf32>
    %13 = vector.broadcast %12 : vector<1x128xf32> to vector<16x128xf32>
    %14 = arith.addf %11, %13 : vector<16x128xf32>
    %cst_11 = arith.constant 0.000000e+00 : f32
    %15 = vector.broadcast %cst_11 : f32 to vector<16x128xf32>
    %16 = arith.maximumf %14, %15 : vector<16x128xf32>
    %17 = arith.truncf %16 : vector<16x128xf32> to vector<16x128xbf16>
    %c0_12 = arith.constant 0 : index
    %c0_13 = arith.constant 0 : index
    %18 = vector.load %arg6[%c0_12, %c0_13] : memref<128x128xbf16, #tpu.memory_space<vmem>>, vector<128x128xbf16>
    %cst_14 = arith.constant dense<0.000000e+00> : vector<16x128xf32>
    %19 = tpu.matmul %17, %18, %cst_14 {dimension_numbers = #tpu.dot_dimension_numbers<[1], [0], [0], [1], [0, 0, 1, 1], [], []>} : vector<16x128xbf16>, vector<128x128xbf16>, vector<16x128xf32> -> vector<16x128xf32>
    %c0_15 = arith.constant 0 : index
    %c0_16 = arith.constant 0 : index
    %20 = vector.load %arg7[%c0_15, %c0_16] : memref<1x128xf32, #tpu.memory_space<vmem>>, vector<1x128xf32>
    %21 = vector.broadcast %20 : vector<1x128xf32> to vector<16x128xf32>
    %22 = arith.addf %19, %21 : vector<16x128xf32>
    %cst_17 = arith.constant dense<0xFF800000> : vector<16xf32>
    %23 = vector.multi_reduction <maximumf>, %22, %cst_17 [1] : vector<16x128xf32> to vector<16xf32>
    %24 = vector.shape_cast %23 : vector<16xf32> to vector<16x1xf32>
    %25 = vector.broadcast %24 : vector<16x1xf32> to vector<16x128xf32>
    %26 = arith.subf %22, %25 : vector<16x128xf32>
    %27 = math.exp %26 : vector<16x128xf32>
    %cst_18 = arith.constant dense<0.000000e+00> : vector<16xf32>
    %28 = vector.multi_reduction <add>, %27, %cst_18 [1] : vector<16x128xf32> to vector<16xf32>
    %29 = vector.shape_cast %28 : vector<16xf32> to vector<16x1xf32>
    %30 = math.log %29 : vector<16x1xf32>
    %31 = vector.broadcast %30 : vector<16x1xf32> to vector<16x128xf32>
    %32 = arith.subf %26, %31 : vector<16x128xf32>
    %c0_19 = arith.constant 0 : index
    %c0_20 = arith.constant 0 : index
    %33 = vector.load %arg8[%c0_19, %c0_20] : memref<16x128xf32, #tpu.memory_space<vmem>>, vector<16x128xf32>
    tpu.vector_store %arg8[%c0_19, %c0_20], %32 {strides = array<i32>} : memref<16x128xf32, #tpu.memory_space<vmem>>, vector<16x128xf32>,
    return
  }
  func.func @transform_0(%arg0: i32) -> (i32, i32) {
    %c0_i32 = arith.constant 0 : i32
    %c0_i32_0 = arith.constant 0 : i32
    return %arg0, %c0_i32 : i32, i32
  }
  func.func @transform_1(%arg0: i32) -> (i32, i32) {
    %c0_i32 = arith.constant 0 : i32
    %c0_i32_0 = arith.constant 0 : i32
    %c0_i32_1 = arith.constant 0 : i32
    return %c0_i32, %c0_i32_0 : i32, i32
  }
  func.func @transform_2(%arg0: i32) -> (i32, i32) {
    %c0_i32 = arith.constant 0 : i32
    %c0_i32_0 = arith.constant 0 : i32
    %c0_i32_1 = arith.constant 0 : i32
    return %c0_i32, %c0_i32_0 : i32, i32
  }
  func.func @transform_3(%arg0: i32) -> (i32, i32) {
    %c0_i32 = arith.constant 0 : i32
    %c0_i32_0 = arith.constant 0 : i32
    %c0_i32_1 = arith.constant 0 : i32
    return %c0_i32, %c0_i32_0 : i32, i32
  }
  func.func @transform_4(%arg0: i32) -> (i32, i32) {
    %c0_i32 = arith.constant 0 : i32
    %c0_i32_0 = arith.constant 0 : i32
    %c0_i32_1 = arith.constant 0 : i32
    return %c0_i32, %c0_i32_0 : i32, i32
  }
  func.func @transform_5(%arg0: i32) -> (i32, i32) {
    %c0_i32 = arith.constant 0 : i32
    %c0_i32_0 = arith.constant 0 : i32
    %c0_i32_1 = arith.constant 0 : i32
    return %c0_i32, %c0_i32_0 : i32, i32
  }
  func.func @transform_6(%arg0: i32) -> (i32, i32) {
    %c0_i32 = arith.constant 0 : i32
    %c0_i32_0 = arith.constant 0 : i32
    %c0_i32_1 = arith.constant 0 : i32
    return %c0_i32, %c0_i32_0 : i32, i32
  }
  func.func @transform_7(%arg0: i32) -> (i32, i32) {
    %c0_i32 = arith.constant 0 : i32
    %c0_i32_0 = arith.constant 0 : i32
    return %arg0, %c0_i32 : i32, i32
  }
}

</mosaic_0001>

<llo_original>
// kernel: actor_forward.1
$region0: #{actor_forward.1}
  #allocation0 [shape = 'u32[]', space=smem, size = 0x4, offset = 0x4, fixed_abs, tag = 'smem constant byte address 0x4 - core index']
  #allocation1 [shape = 'u32[144,128]{1,0:T(1,128)}', space=vmem, size = 0x12000, scoped, tag = 'internal scratch']
  %s0 = inlined_call_operand.vmem [shape: f32[16,8], index: 0, kind: input, shape index: {}]
  %s1 = inlined_call_operand.vmem [shape: bf16[8,128], index: 1, kind: input, shape index: {}]
  %s2 = inlined_call_operand.vmem [shape: f32[1,128], index: 2, kind: input, shape index: {}]
  %s3 = inlined_call_operand.hbm [shape: bf16[128,128], index: 3, kind: input, shape index: {}]
  %s4 = inlined_call_operand.vmem [shape: f32[1,128], index: 4, kind: input, shape index: {}]
  %s5 = inlined_call_operand.hbm [shape: bf16[128,128], index: 5, kind: input, shape index: {}]
  %s6 = inlined_call_operand.vmem [shape: f32[1,128], index: 6, kind: input, shape index: {}]
  %s7 = inlined_call_operand.vmem [shape: f32[16,128], index: 7, kind: output, shape index: {}]
  %s8 = sld [smem:[#allocation0]]
  $region46: #{actor_forward.1} parent=0
    _
  %s10 = ssub.s32 1, %s8
  %s11 = scalar_select 0, %s10, %s8
  $region1: #{actor_forward.1} parent=0
    #allocation2 [shape = 'u8[32768]{0}', space=vmem, size = 0x8000, scoped, tag = 'input window, operand 3, single buffered']
    #allocation3 [shape = 's32[1]{0}', space=sflag, size = 0x4, scoped, tag = 'scoped memory for actor_forward.1']
    #allocation4 [shape = 'u8[32768]{0}', space=vmem, size = 0x8000, scoped, tag = 'input window, operand 5, single buffered']
    #allocation5 [shape = 's32[1]{0}', space=sflag, size = 0x4, scoped, tag = 'scoped memory for actor_forward.1']
    %12 = vsyncpa [#allocation3], 0
    %13 = vsyncpa [#allocation5], 0
    // Predicated region
    $region2: #{actor_forward.1} parent=1 // pred_check
      _
    $region3: #{actor_forward.1} parent=1 // pred_check_branch
      %15 = sbr.rel (0) target = $region5
    $region4: #{actor_forward.1} parent=1 // pred_region
      _
    $region5: #{actor_forward.1} parent=1 // pred_fallthru
      _
    // Predicated region
    $region6: #{actor_forward.1} parent=1 // pred_check
      _
    $region7: #{actor_forward.1} parent=1 // pred_check_branch
      %17 = sbr.rel (0) target = $region9
    $region8: #{actor_forward.1} parent=1 // pred_region
      _
    $region9: #{actor_forward.1} parent=1 // pred_fallthru
      _
    // Predicated region
    $region10: #{actor_forward.1} parent=1 // pred_check
      _
    $region11: #{actor_forward.1} parent=1 // pred_check_branch
      %19 = sbr.rel (0) target = $region13
    $region12: #{actor_forward.1} parent=1 // pred_region
      _
    $region13: #{actor_forward.1} parent=1 // pred_fallthru
      _
    // Predicated region
    $region14: #{actor_forward.1} parent=1 // pred_check
      _
    $region15: #{actor_forward.1} parent=1 // pred_check_branch
      %21 = sbr.rel (0) target = $region17
    $region16: #{actor_forward.1} parent=1 // pred_region
      %s23 = ssub.s32 1024, 1024
      %24 = vsyncadd [#allocation3], %s23
      %s25 = sshll.u32 [#allocation2], 4
      %s26 = int_to_ptr.vmem [resolvable:$true] %s25
      %31 = dma.hbm_to_vmem [thread:$0]  %s3, 1024, %s26, [#allocation3], 64, 64, 4
    $region17: #{actor_forward.1} parent=1 // pred_fallthru
      _
    // Predicated region
    $region18: #{actor_forward.1} parent=1 // pred_check
      _
    $region19: #{actor_forward.1} parent=1 // pred_check_branch
      %33 = sbr.rel (0) target = $region21
    $region20: #{actor_forward.1} parent=1 // pred_region
      _
    $region21: #{actor_forward.1} parent=1 // pred_fallthru
      _
    // Predicated region
    $region22: #{actor_forward.1} parent=1 // pred_check
      _
    $region23: #{actor_forward.1} parent=1 // pred_check_branch
      %35 = sbr.rel (0) target = $region25
    $region24: #{actor_forward.1} parent=1 // pred_region
      %s37 = ssub.s32 1024, 1024
      %38 = vsyncadd [#allocation5], %s37
      %s39 = sshll.u32 [#allocation4], 4
      %s40 = int_to_ptr.vmem [resolvable:$true] %s39
      %45 = dma.hbm_to_vmem [thread:$0]  %s5, 1024, %s40, [#allocation5], 64, 64, 4
    $region25: #{actor_forward.1} parent=1 // pred_fallthru
      _
    // Predicated region
    $region26: #{actor_forward.1} parent=1 // pred_check
      _
    $region27: #{actor_forward.1} parent=1 // pred_check_branch
      %47 = sbr.rel (0) target = $region29
    $region28: #{actor_forward.1} parent=1 // pred_region
      _
    $region29: #{actor_forward.1} parent=1 // pred_fallthru
      _
    // Predicated region
    $region30: #{actor_forward.1} parent=1 // pred_check
      _
    $region31: #{actor_forward.1} parent=1 // pred_check_branch
      %49 = sbr.rel (0) target = $region33
    $region32: #{actor_forward.1} parent=1 // pred_region
      %50 = dma.done [#allocation3], 1024
    $region33: #{actor_forward.1} parent=1 // pred_fallthru
      _
    // Predicated region
    $region34: #{actor_forward.1} parent=1 // pred_check
      _
    $region35: #{actor_forward.1} parent=1 // pred_check_branch
      %52 = sbr.rel (0) target = $region37
    $region36: #{actor_forward.1} parent=1 // pred_region
      %53 = dma.done [#allocation5], 1024
    $region37: #{actor_forward.1} parent=1 // pred_fallthru
      _
    %v55 = vld [vmem:[%s0] sm:$0xff]
    %v56 = vld [vmem:[%s0 + $0x8] sm:$0xff]
    %v57 = vpack.c.bf16 %v56, %v55
    %v58 = vld [vmem:[%s1] sm:$0xf]
    %v59 = vld [vmem:[%s2] sm:$0x1]
    %v61 = vlaneseq
    %v62 = vshrl.u32 %v61, 7
    %v63 = vsub.s32 0, %v62
    %v64 = vrot.slane %v59, %v63
    %vm66 = vcmask 64512
    %v68 = vsel %vm66, %v57, 0
    %vm70 = vcmask 1043456
    %v72 = vsel %vm70, %v58, 0
    %74 = vmatprep.subr.bf16.mxu0 0
    %75 = vmatpush1.bf16.msra.mxu0 %v72
    %76 = vmatprep.subr.bf16.mxu0 0
    %77 = vmatpush1.bf16.msra.mxu0 0
    %78 = vmatprep.subr.bf16.mxu0 0
    %79 = vmatpush1.bf16.msra.mxu0 0
    %80 = vmatprep.subr.bf16.mxu0 0
    %81 = vmatpush1.bf16.msra.mxu0 0
    %82 = vmatprep.subr.bf16.mxu0 0
    %83 = vmatpush1.bf16.msra.mxu0 0
    %84 = vmatprep.subr.bf16.mxu0 0
    %85 = vmatpush1.bf16.msra.mxu0 0
    %86 = vmatprep.subr.bf16.mxu0 0
    %87 = vmatpush1.bf16.msra.mxu0 0
    %88 = vmatprep.subr.bf16.mxu0 0
    %89 = vmatpush1.bf16.msra.mxu0 0
    %90 = vmatprep.subr.bf16.mxu0 0
    %91 = vmatpush1.bf16.msra.mxu0 0
    %92 = vmatprep.subr.bf16.mxu0 0
    %93 = vmatpush1.bf16.msra.mxu0 0
    %94 = vmatprep.subr.bf16.mxu0 0
    %95 = vmatpush1.bf16.msra.mxu0 0
    %96 = vmatprep.subr.bf16.mxu0 0
    %97 = vmatpush1.bf16.msra.mxu0 0
    %98 = vmatprep.subr.bf16.mxu0 0
    %99 = vmatpush1.bf16.msra.mxu0 0
    %100 = vmatprep.subr.bf16.mxu0 0
    %101 = vmatpush1.bf16.msra.mxu0 0
    %102 = vmatprep.subr.bf16.mxu0 0
    %103 = vmatpush1.bf16.msra.mxu0 0
    %104 = vmatprep.subr.bf16.mxu0 0
    %105 = vmatpush1.bf16.msra.mxu0 0
    %106 = vmatprep.mubr.bf16.mxu0 0
    %107 = vmatmul.mubr.bf16.gmra.mrb[0].mxu0 %v68
    %v108 = vpop.f32.mrb[0].mxu0
    %v109 = vadd.f32 %v64, %v108
    %v110 = vpop.f32.mrb[0].mxu0
    %v111 = vpop.f32.mrb[0].mxu0
    %v112 = vadd.f32 %v64, %v111
    %v113 = vpop.f32.mrb[0].mxu0
    %114 = vdwg.mxu0
    %v115 = vmax.f32 %v109, 0.0
    %v116 = vmax.f32 %v112, 0.0
    %v117 = vpack.c.bf16 %v116, %v115
    %v118 = vld [vmem:[#allocation2] sm:$0xf]
    %v119 = vld [vmem:[#allocation2 + $0x4] sm:$0xf]
    %v120 = vld [vmem:[#allocation2 + $0x8] sm:$0xf]
    %v121 = vld [vmem:[#allocation2 + $0xc] sm:$0xf]
    %v122 = vld [vmem:[#allocation2 + $0x10] sm:$0xf]
    %v123 = vld [vmem:[#allocation2 + $0x14] sm:$0xf]
    %v124 = vld [vmem:[#allocation2 + $0x18] sm:$0xf]
    %v125 = vld [vmem:[#allocation2 + $0x1c] sm:$0xf]
    %v126 = vld [vmem:[#allocation2 + $0x20] sm:$0xf]
    %v127 = vld [vmem:[#allocation2 + $0x24] sm:$0xf]
    %v128 = vld [vmem:[#allocation2 + $0x28] sm:$0xf]
    %v129 = vld [vmem:[#allocation2 + $0x2c] sm:$0xf]
    %v130 = vld [vmem:[#allocation2 + $0x30] sm:$0xf]
    %v131 = vld [vmem:[#allocation2 + $0x34] sm:$0xf]
    %v132 = vld [vmem:[#allocation2 + $0x38] sm:$0xf]
    %v133 = vld [vmem:[#allocation2 + $0x3c] sm:$0xf]
    %v134 = vld [vmem:[%s4] sm:$0x1]
    %v136 = vlaneseq
    %v137 = vshrl.u32 %v136, 7
    %v138 = vsub.s32 0, %v137
    %v139 = vrot.slane %v134, %v138
    %v157 = vunpack.c.l.b16 %v118
    %v158 = vunpack.c.l.b16 %v119
    %v159 = vunpack.c.l.b16 %v120
    %v160 = vunpack.c.l.b16 %v121
    %v161 = vunpack.c.l.b16 %v122
    %v162 = vunpack.c.l.b16 %v123
    %v163 = vunpack.c.l.b16 %v124
    %v164 = vunpack.c.l.b16 %v125
    %v165 = vunpack.c.l.b16 %v126
    %v166 = vunpack.c.l.b16 %v127
    %v167 = vunpack.c.l.b16 %v128
    %v168 = vunpack.c.l.b16 %v129
    %v169 = vunpack.c.l.b16 %v130
    %v170 = vunpack.c.l.b16 %v131
    %v171 = vunpack.c.l.b16 %v132
    %v172 = vunpack.c.l.b16 %v133
    %v173 = vpack.c.b16 %v158, %v157
    %v174 = vpack.c.b16 %v160, %v159
    %v175 = vpack.c.b16 %v162, %v161
    %v176 = vpack.c.b16 %v164, %v163
    %v177 = vpack.c.b16 %v166, %v165
    %v178 = vpack.c.b16 %v168, %v167
    %v179 = vpack.c.b16 %v170, %v169
    %v180 = vpack.c.b16 %v172, %v171
    %189 = vmatprep.subr.bf16.mxu0 0
    %190 = vmatpush1.bf16.msra.mxu0 %v173
    %191 = vmatprep.subr.bf16.mxu0 0
    %192 = vmatpush1.bf16.msra.mxu0 %v174
    %193 = vmatprep.subr.bf16.mxu0 0
    %194 = vmatpush1.bf16.msra.mxu0 %v175
    %195 = vmatprep.subr.bf16.mxu0 0
    %196 = vmatpush1.bf16.msra.mxu0 %v176
    %197 = vmatprep.subr.bf16.mxu0 0
    %198 = vmatpush1.bf16.msra.mxu0 %v177
    %199 = vmatprep.subr.bf16.mxu0 0
    %200 = vmatpush1.bf16.msra.mxu0 %v178
    %201 = vmatprep.subr.bf16.mxu0 0
    %202 = vmatpush1.bf16.msra.mxu0 %v179
    %203 = vmatprep.subr.bf16.mxu0 0
    %204 = vmatpush1.bf16.msra.mxu0 %v180
    %205 = vmatprep.subr.bf16.mxu0 0
    %206 = vmatpush1.bf16.msra.mxu0 0
    %207 = vmatprep.subr.bf16.mxu0 0
    %208 = vmatpush1.bf16.msra.mxu0 0
    %209 = vmatprep.subr.bf16.mxu0 0
    %210 = vmatpush1.bf16.msra.mxu0 0
    %211 = vmatprep.subr.bf16.mxu0 0
    %212 = vmatpush1.bf16.msra.mxu0 0
    %213 = vmatprep.subr.bf16.mxu0 0
    %214 = vmatpush1.bf16.msra.mxu0 0
    %215 = vmatprep.subr.bf16.mxu0 0
    %216 = vmatpush1.bf16.msra.mxu0 0
    %217 = vmatprep.subr.bf16.mxu0 0
    %218 = vmatpush1.bf16.msra.mxu0 0
    %219 = vmatprep.subr.bf16.mxu0 0
    %220 = vmatpush1.bf16.msra.mxu0 0
    %221 = vmatprep.mubr.bf16.mxu0 0
    %222 = vmatmul.mubr.bf16.gmra.mrb[0].mxu0 %v117
    %v223 = vpop.f32.mrb[0].mxu0
    %v224 = vadd.f32 %v139, %v223
    %v225 = vpop.f32.mrb[0].mxu0
    %v226 = vpop.f32.mrb[0].mxu0
    %v227 = vadd.f32 %v139, %v226
    %v228 = vpop.f32.mrb[0].mxu0
    %229 = vdwg.mxu0
    %v230 = vmax.f32 %v224, 0.0
    %v231 = vmax.f32 %v227, 0.0
    %v232 = vpack.c.bf16 %v231, %v230
    %v233 = vld [vmem:[#allocation4] sm:$0xf]
    %v234 = vld [vmem:[#allocation4 + $0x4] sm:$0xf]
    %v235 = vld [vmem:[#allocation4 + $0x8] sm:$0xf]
    %v236 = vld [vmem:[#allocation4 + $0xc] sm:$0xf]
    %v237 = vld [vmem:[#allocation4 + $0x10] sm:$0xf]
    %v238 = vld [vmem:[#allocation4 + $0x14] sm:$0xf]
    %v239 = vld [vmem:[#allocation4 + $0x18] sm:$0xf]
    %v240 = vld [vmem:[#allocation4 + $0x1c] sm:$0xf]
    %v241 = vld [vmem:[#allocation4 + $0x20] sm:$0xf]
    %v242 = vld [vmem:[#allocation4 + $0x24] sm:$0xf]
    %v243 = vld [vmem:[#allocation4 + $0x28] sm:$0xf]
    %v244 = vld [vmem:[#allocation4 + $0x2c] sm:$0xf]
    %v245 = vld [vmem:[#allocation4 + $0x30] sm:$0xf]
    %v246 = vld [vmem:[#allocation4 + $0x34] sm:$0xf]
    %v247 = vld [vmem:[#allocation4 + $0x38] sm:$0xf]
    %v248 = vld [vmem:[#allocation4 + $0x3c] sm:$0xf]
    %v249 = vld [vmem:[%s6] sm:$0x1]
    %v251 = vlaneseq
    %v252 = vshrl.u32 %v251, 7
    %v253 = vsub.s32 0, %v252
    %v254 = vrot.slane %v249, %v253
    %v272 = vunpack.c.l.b16 %v233
    %v273 = vunpack.c.l.b16 %v234
    %v274 = vunpack.c.l.b16 %v235
    %v275 = vunpack.c.l.b16 %v236
    %v276 = vunpack.c.l.b16 %v237
    %v277 = vunpack.c.l.b16 %v238
    %v278 = vunpack.c.l.b16 %v239
    %v279 = vunpack.c.l.b16 %v240
    %v280 = vunpack.c.l.b16 %v241
    %v281 = vunpack.c.l.b16 %v242
    %v282 = vunpack.c.l.b16 %v243
    %v283 = vunpack.c.l.b16 %v244
    %v284 = vunpack.c.l.b16 %v245
    %v285 = vunpack.c.l.b16 %v246
    %v286 = vunpack.c.l.b16 %v247
    %v287 = vunpack.c.l.b16 %v248
    %v288 = vpack.c.b16 %v273, %v272
    %v289 = vpack.c.b16 %v275, %v274
    %v290 = vpack.c.b16 %v277, %v276
    %v291 = vpack.c.b16 %v279, %v278
    %v292 = vpack.c.b16 %v281, %v280
    %v293 = vpack.c.b16 %v283, %v282
    %v294 = vpack.c.b16 %v285, %v284
    %v295 = vpack.c.b16 %v287, %v286
    %304 = vmatprep.subr.bf16.mxu0 0
    %305 = vmatpush1.bf16.msra.mxu0 %v288
    %306 = vmatprep.subr.bf16.mxu0 0
    %307 = vmatpush1.bf16.msra.mxu0 %v289
    %308 = vmatprep.subr.bf16.mxu0 0
    %309 = vmatpush1.bf16.msra.mxu0 %v290
    %310 = vmatprep.subr.bf16.mxu0 0
    %311 = vmatpush1.bf16.msra.mxu0 %v291
    %312 = vmatprep.subr.bf16.mxu0 0
    %313 = vmatpush1.bf16.msra.mxu0 %v292
    %314 = vmatprep.subr.bf16.mxu0 0
    %315 = vmatpush1.bf16.msra.mxu0 %v293
    %316 = vmatprep.subr.bf16.mxu0 0
    %317 = vmatpush1.bf16.msra.mxu0 %v294
    %318 = vmatprep.subr.bf16.mxu0 0
    %319 = vmatpush1.bf16.msra.mxu0 %v295
    %320 = vmatprep.subr.bf16.mxu0 0
    %321 = vmatpush1.bf16.msra.mxu0 0
    %322 = vmatprep.subr.bf16.mxu0 0
    %323 = vmatpush1.bf16.msra.mxu0 0
    %324 = vmatprep.subr.bf16.mxu0 0
    %325 = vmatpush1.bf16.msra.mxu0 0
    %326 = vmatprep.subr.bf16.mxu0 0
    %327 = vmatpush1.bf16.msra.mxu0 0
    %328 = vmatprep.subr.bf16.mxu0 0
    %329 = vmatpush1.bf16.msra.mxu0 0
    %330 = vmatprep.subr.bf16.mxu0 0
    %331 = vmatpush1.bf16.msra.mxu0 0
    %332 = vmatprep.subr.bf16.mxu0 0
    %333 = vmatpush1.bf16.msra.mxu0 0
    %334 = vmatprep.subr.bf16.mxu0 0
    %335 = vmatpush1.bf16.msra.mxu0 0
    %336 = vmatprep.mubr.bf16.mxu0 0
    %337 = vmatmul.mubr.bf16.gmra.mrb[0].mxu0 %v232
    %v338 = vpop.f32.mrb[0].mxu0
    %v339 = vadd.f32 %v254, %v338
    %v340 = vpop.f32.mrb[0].mxu0
    %v341 = vpop.f32.mrb[0].mxu0
    %v342 = vadd.f32 %v254, %v341
    %v343 = vpop.f32.mrb[0].mxu0
    %344 = vdwg.mxu0
    %345 = vmax.xlane.f32.xlu0 %v339
    %v346 = vpop.xlane.xlu0 %345
    %347 = vmax.xlane.f32.xlu0 %v342
    %v348 = vpop.xlane.xlu0 %347
    %v349 = vsub.f32 %v339, %v346
    %v350 = vsub.f32 %v342, %v348
    %v351 = vmul.f32 %v349, 1.442695
    %v352 = vpow.pop %v351
    %v353 = vmul.f32 %v350, 1.442695
    %v354 = vpow.pop %v353
    %355 = vadd.xlane.f32.xlu0 %v352
    %v356 = vpop.xlane.xlu0 %355
    %357 = vadd.xlane.f32.xlu0 %v354
    %v358 = vpop.xlane.xlu0 %357
    %v359 = vlog2.pop %v356
    %v360 = vmul.f32 %v359, 0.6931472
    %v361 = vlog2.pop %v358
    %v362 = vmul.f32 %v361, 0.6931472
    %v363 = vsub.f32 %v349, %v360
    %v364 = vsub.f32 %v350, %v362
    %365 = vst [vmem:[%s7] sm:$0xff] %v363
    %366 = vst [vmem:[%s7 + $0x8] sm:$0xff] %v364
    // Predicated region
    $region38: #{actor_forward.1} parent=1 // pred_check
      _
    $region39: #{actor_forward.1} parent=1 // pred_check_branch
      %368 = sbr.rel (0) target = $region41
    $region40: #{actor_forward.1} parent=1 // pred_region
      _
    $region41: #{actor_forward.1} parent=1 // pred_fallthru
      _
    // Predicated region
    $region42: #{actor_forward.1} parent=1 // pred_check
      _
    $region43: #{actor_forward.1} parent=1 // pred_check_branch
      %370 = sbr.rel (0) target = $region45
    $region44: #{actor_forward.1} parent=1 // pred_region
      _
    $region45: #{actor_forward.1} parent=1 // pred_fallthru
      _
    %371 = vsyncpa [#allocation3], 1
    %372 = vsyncpa [#allocation5], 1

</llo_original>
